<compile_context>
chip_gen: v7x
topology: tpu7x:2x2x1
jax: 0.10.0
libtpu: 0.0.40
codegen_flags: <defaults>
</compile_context>

<pallas_src>
import functools

import jax
import jax.numpy as jnp
from jax.experimental import pallas as pl
from jax.experimental.pallas import tpu as pltpu


def _lsa_kernel(w_ref, x_ref, o_ref):
    # w_ref: [1, F]        Linear(F, 1) weight (row vector), f32
    # x_ref: [M, TN, F]    one (batch, token-tile) slab; batch dim squeezed
    # o_ref: [TN, F]
    x = x_ref[...]
    xf = x.astype(jnp.float32)            # f32 for score precision + accumulation.
                                          # (bf16 inputs: the multiply below promotes
                                          # to f32 anyway since e is f32.)
    w = w_ref[...]                        # [1, F] -> broadcasts over [M, TN, F]

    # scores[m, n] = sum_f x[m, n, f] * w[f]      (Linear(F,1); bias omitted:
    # softmax over M is invariant to a uniform shift).
    # NOTE: at large F this contraction should move to the MXU
    # (jnp.dot on a [M*TN, F] view); at F=32 the lane reduce is cheap and the
    # kernel stays HBM-bound, so we keep the guaranteed-lowering VPU/XLU form.
    scores = jnp.sum(xf * w, axis=-1, keepdims=True)        # [M, TN, 1]

    # Numerically stable softmax over the group axis M, fused with aggregation.
    m_max = jnp.max(scores, axis=0, keepdims=True)           # [1, TN, 1]
    e = jnp.exp(scores - m_max)                               # [M, TN, 1]
    denom = jnp.sum(e, axis=0)                                # [TN, 1]
    acc = jnp.sum(xf * e, axis=0)                             # [TN, F]  f32 accum

    # Single normalisation at the end. approx=True would use the (idle) EUP but
    # its ~2^-13 relative error can exceed the 1e-5 test tolerance.
    out = acc * pl.reciprocal(denom, approx=False)            # [TN, F]
    o_ref[...] = out.astype(o_ref.dtype)


@functools.partial(jax.jit, static_argnames=("tn",))
def learned_soft_aggregate(x, weight, bias=None, *, tn=512):
    """x: [B, M, N, F]; weight: [1, F] (nn.Linear(F,1).weight); bias: [1] (unused:
    a uniform shift along the softmax axis does not change the result)."""
    del bias  # mathematically redundant before softmax over the group axis
    B, M, N, F = x.shape
    w2 = weight.reshape(1, F).astype(jnp.float32)

    tn = min(tn, N)                      # token-tile size (sublane dim of the block)
    n_blocks = pl.cdiv(N, tn)            # ragged edge handled by masked writeback

    return pl.pallas_call(
        _lsa_kernel,
        out_shape=jax.ShapeDtypeStruct((B, N, F), x.dtype),
        grid_spec=pltpu.PrefetchScalarGridSpec(
            num_scalar_prefetch=0,
            grid=(B, n_blocks),
            in_specs=[
                pl.BlockSpec((1, F), lambda b, n: (0, 0)),                          # weight
                pl.BlockSpec((pl.Squeezed(), M, tn, F), lambda b, n: (b, 0, n, 0)),  # x
            ],
            out_specs=pl.BlockSpec((pl.Squeezed(), tn, F), lambda b, n: (b, n, 0)),
        ),
        compiler_params=pltpu.CompilerParams(
            dimension_semantics=("parallel", "parallel"),   # both axes shardable (v7x 2 TCs)
            vmem_limit_bytes=48 * 1024 * 1024,              # headroom under v7x 64 MiB
        ),
    )(w2, x)


def _reference(x, weight, bias):
    # pure-JAX reference of the PyTorch forward (bias included to prove equivalence)
    scores = jnp.einsum("bmnf,f->bmn", x, weight.reshape(-1)) + bias.reshape(())
    probs = jax.nn.softmax(scores, axis=1)
    return jnp.sum(x * probs[..., None], axis=1)


if __name__ == "__main__":
    B, M, N, F = 2, 8, 16, 32          # batch, modes (group_dim=1), tokens, num_feat

    key = jax.random.PRNGKey(0)
    kx, kw, kb = jax.random.split(key, 3)

    x = jax.random.normal(kx, (B, M, N, F), dtype=jnp.float32)

    # Deterministic init mimicking nn.Linear(num_feat, 1): U(-1/sqrt(F), 1/sqrt(F))
    bound = 1.0 / (F ** 0.5)
    weight = jax.random.uniform(kw, (1, F), minval=-bound, maxval=bound, dtype=jnp.float32)
    bias = jax.random.uniform(kb, (1,), minval=-bound, maxval=bound, dtype=jnp.float32)

    out = learned_soft_aggregate(x, weight, bias)
    out = jax.block_until_ready(out)

    ref = _reference(x, weight, bias)
    assert out.shape == (B, N, F), out.shape
    err = float(jnp.max(jnp.abs(out - ref)))
    assert jnp.allclose(out, ref, rtol=1e-5, atol=1e-5), err

    print("KERNEL_OK")
</pallas_src>

<mosaic_0001>
module attributes {stable_mosaic.version = 11 : i64} {
  func.func @_lsa_kernel(%arg0: i32, %arg1: i32, %arg2: memref<1x32xf32, #tpu.memory_space<vmem>>, %arg3: memref<1x8x16x32xf32, #tpu.memory_space<vmem>>, %arg4: memref<1x16x32xf32, #tpu.memory_space<vmem>>) attributes {dimension_semantics = [#tpu.dimension_semantics<parallel>, #tpu.dimension_semantics<parallel>], iteration_bounds = array<i64: 2, 1>, scalar_prefetch = 0 : i64, scratch_operands = 0 : i64, tpu.core_type = #tpu.core_type<tc>, window_params = [{pipeline_mode = #tpu.pipeline_mode<synchronous>, transform_indices = @transform_0, window_bounds = array<i64: 1, 32>}, {transform_indices = @transform_1, window_bounds = array<i64: 1, 8, 16, 32>}, {transform_indices = @transform_2, window_bounds = array<i64: 1, 16, 32>}]} {
    %c0 = arith.constant 0 : index
    %c0_0 = arith.constant 0 : index
    %c0_1 = arith.constant 0 : index
    %c0_2 = arith.constant 0 : index
    %0 = vector.load %arg3[%c0, %c0_0, %c0_1, %c0_2] : memref<1x8x16x32xf32, #tpu.memory_space<vmem>>, vector<1x8x16x32xf32>
    %1 = vector.shape_cast %0 : vector<1x8x16x32xf32> to vector<8x16x32xf32>
    %c0_3 = arith.constant 0 : index
    %c0_4 = arith.constant 0 : index
    %2 = vector.load %arg2[%c0_3, %c0_4] : memref<1x32xf32, #tpu.memory_space<vmem>>, vector<1x32xf32>
    %3 = vector.shape_cast %2 : vector<1x32xf32> to vector<1x1x32xf32>
    %4 = vector.broadcast %3 : vector<1x1x32xf32> to vector<8x16x32xf32>
    %5 = arith.mulf %1, %4 : vector<8x16x32xf32>
    %cst = arith.constant dense<0.000000e+00> : vector<8x16xf32>
    %6 = vector.multi_reduction <add>, %5, %cst [2] : vector<8x16x32xf32> to vector<8x16xf32>
    %7 = vector.shape_cast %6 : vector<8x16xf32> to vector<8x16x1xf32>
    %cst_5 = arith.constant dense<0xFF800000> : vector<16x1xf32>
    %8 = vector.multi_reduction <maximumf>, %7, %cst_5 [0] : vector<8x16x1xf32> to vector<16x1xf32>
    %9 = vector.shape_cast %8 : vector<16x1xf32> to vector<1x16x1xf32>
    %10 = vector.broadcast %9 : vector<1x16x1xf32> to vector<8x16x1xf32>
    %11 = arith.subf %7, %10 : vector<8x16x1xf32>
    %12 = math.exp %11 : vector<8x16x1xf32>
    %cst_6 = arith.constant dense<0.000000e+00> : vector<16x1xf32>
    %13 = vector.multi_reduction <add>, %12, %cst_6 [0] : vector<8x16x1xf32> to vector<16x1xf32>
    %14 = vector.broadcast %12 : vector<8x16x1xf32> to vector<8x16x32xf32>
    %15 = arith.mulf %1, %14 : vector<8x16x32xf32>
    %cst_7 = arith.constant dense<0.000000e+00> : vector<16x32xf32>
    %16 = vector.multi_reduction <add>, %15, %cst_7 [0] : vector<8x16x32xf32> to vector<16x32xf32>
    %17 = tpu.reciprocal %13 : vector<16x1xf32> -> vector<16x1xf32>
    %18 = vector.broadcast %17 : vector<16x1xf32> to vector<16x32xf32>
    %19 = arith.mulf %16, %18 : vector<16x32xf32>
    %c0_8 = arith.constant 0 : index
    %c0_9 = arith.constant 0 : index
    %c0_10 = arith.constant 0 : index
    %20 = vector.load %arg4[%c0_8, %c0_9, %c0_10] : memref<1x16x32xf32, #tpu.memory_space<vmem>>, vector<1x16x32xf32>
    %21 = vector.shape_cast %20 : vector<1x16x32xf32> to vector<16x32xf32>
    %22 = vector.shape_cast %19 : vector<16x32xf32> to vector<1x16x32xf32>
    tpu.vector_store %arg4[%c0_8, %c0_9, %c0_10], %22 {strides = array<i32>} : memref<1x16x32xf32, #tpu.memory_space<vmem>>, vector<1x16x32xf32>,
    return
  }
  func.func @transform_0(%arg0: i32, %arg1: i32) -> (i32, i32) {
    %c0_i32 = arith.constant 0 : i32
    %c0_i32_0 = arith.constant 0 : i32
    %c0_i32_1 = arith.constant 0 : i32
    return %c0_i32, %c0_i32_0 : i32, i32
  }
  func.func @transform_1(%arg0: i32, %arg1: i32) -> (i32, i32, i32, i32) {
    %c0_i32 = arith.constant 0 : i32
    %c0_i32_0 = arith.constant 0 : i32
    %c0_i32_1 = arith.constant 0 : i32
    return %arg0, %c0_i32, %arg1, %c0_i32_0 : i32, i32, i32, i32
  }
  func.func @transform_2(%arg0: i32, %arg1: i32) -> (i32, i32, i32) {
    %c0_i32 = arith.constant 0 : i32
    %c0_i32_0 = arith.constant 0 : i32
    return %arg0, %arg1, %c0_i32 : i32, i32, i32
  }
}

</mosaic_0001>

<llo_original>
// kernel: learned_soft_aggregate.1
$region0: #{learned_soft_aggregate.1}
  #allocation0 [shape = 'u32[]', space=smem, size = 0x4, offset = 0x4, fixed_abs, tag = 'smem constant byte address 0x4 - core index']
  #allocation1 [shape = 'u32[144,128]{1,0:T(1,128)}', space=vmem, size = 0x12000, scoped, tag = 'internal scratch']
  %s0 = inlined_call_operand.vmem [shape: f32[1,32], index: 0, kind: input, shape index: {}]
  %s1 = inlined_call_operand.hbm [shape: f32[2,8,16,32], index: 1, kind: input, shape index: {}]
  %s2 = inlined_call_operand.hbm [shape: f32[2,16,32], index: 2, kind: output, shape index: {}]
  %s3 = sld [smem:[#allocation0]]
  $region45: #{learned_soft_aggregate.1} parent=0
    _
  %s5 = ssub.s32 1, %s3
  %s6 = scalar_select 0, %s5, %s3
  $region1: #{learned_soft_aggregate.1} parent=0
    #allocation2 [shape = 'u8[131072]{0}', space=vmem, size = 0x20000, scoped, tag = 'input window, operand 1']
    #allocation3 [shape = 's32[2]{0}', space=sflag, size = 0x8, scoped, tag = 'scoped memory for learned_soft_aggregate.1']
    #allocation4 [shape = 's32[2]{0}', space=sflag, size = 0x8, scoped, tag = 'scoped memory for learned_soft_aggregate.1']
    #allocation5 [shape = 'u8[16384]{0}', space=vmem, size = 0x4000, scoped, tag = 'output window, operand 0']
    %7 = vsyncpa [#allocation3], 0
    %s8 = scalar_lea.sflag [#allocation3], 1
    %9 = vsyncpa %s8, 0
    %10 = vsyncpa [#allocation4], 0
    %s11 = scalar_lea.sflag [#allocation4], 1
    %12 = vsyncpa %s11, 0
    loop: start=0, step=1, limit=4
    $region2: #{learned_soft_aggregate.1} parent=1 // loop_pre_header
      _
    $region3: #{learned_soft_aggregate.1} parent=1 // loop_header
      %s14 = sphi 0, %s18
      %p15 = scmp.ge.s32.totalorder %s14, 4
      %s21 = sphi 0, %s33
      %s22 = sphi 0, %s29
      %s23 = sphi 0, %s21
      %s24 = sphi 0, %s22
      %s25 = sphi 0, %s23
      %s26 = sphi 0, %s24
      %s34 = sphi 0, %s34
      %s36 = sphi 0, %s34
      %s37 = sphi 0, %s36
      %s51 = sphi 0, %s37
      %s59 = sphi 0, %s61
      %s62 = sphi 0, %s59
      %s63 = sphi 0, %s62
      %s79 = sphi 0, %s63
      %s87 = sphi 0, %s89
      %s90 = sphi 0, %s87
      %s91 = sphi 0, %s90
      %s107 = sphi 0, %s91
    $region4: #{learned_soft_aggregate.1} parent=1 // loop_header_branch
      %17 = sbr.rel (%p15) target = $region8
    $region5: #{learned_soft_aggregate.1} parent=1 // loop_body
      %s19 = ssub.s32 %s14, 1
      %s20 = ssub.s32 %s14, 2
      %s27 = sadd.s32 1, %s22
      %p28 = scmp.ge.s32.totalorder %s27, 1
      %s29 = scalar_select %p28, 0, %s27
      %s30 = sadd.s32 1, %s21
      %s31 = scalar_select %p28, %s30, %s21
      %p32 = scmp.ge.s32.totalorder %s31, 2
      %s33 = scalar_select %p32, 0, %s31
      %s35 = sadd.s32 %s34, 1
      %p38 = scmp.eq.s32.totalorder %s14, 1
      %p39 = scmp.ne.s32.totalorder %s34, %s36
      %p40 = scmp.eq.s32.totalorder %s14, 0
      %p41 = por %p39, %p40
      %p42 = scmp.ne.s32.totalorder %s34, %s36
      %p43 = scmp.eq.s32.totalorder %s19, 1
      %p44 = por %p42, %p43
      %p45 = scmp.ne.s32.totalorder %s36, %s37
      %p46 = scmp.eq.s32.totalorder %s19, 0
      %p47 = por %p45, %p46
      %p48 = scmp.ne.s32.totalorder %s36, %s37
      %p49 = scmp.eq.s32.totalorder %s20, 1
      %p50 = por %p48, %p49
      %p52 = scmp.ne.s32.totalorder %s37, %s51
      %p53 = scmp.eq.s32.totalorder %s20, 0
      %p54 = por %p52, %p53
      %s55 = ssub.s32 %s21, %s33
      %s56 = ssub.s32 %s22, %s29
      %s57 = sor.u32 %s55, %s56
      %p58 = scmp.eq.s32.totalorder %s57, 0
      %s60 = sadd.s32 %s59, 1
      %s61 = scalar_select %p58, %s59, %s60
      %p64 = pneg %p58
      %p65 = scmp.eq.s32.totalorder %s14, 1
      %p66 = por %p64, %p65
      %p67 = scmp.ne.s32.totalorder %s59, %s62
      %p68 = scmp.eq.s32.totalorder %s14, 0
      %p69 = por %p67, %p68
      %p70 = scmp.ne.s32.totalorder %s59, %s62
      %p71 = scmp.eq.s32.totalorder %s19, 1
      %p72 = por %p70, %p71
      %p73 = scmp.ne.s32.totalorder %s62, %s63
      %p74 = scmp.eq.s32.totalorder %s19, 0
      %p75 = por %p73, %p74
      %p76 = scmp.ne.s32.totalorder %s62, %s63
      %p77 = scmp.eq.s32.totalorder %s20, 1
      %p78 = por %p76, %p77
      %p80 = scmp.ne.s32.totalorder %s63, %s79
      %p81 = scmp.eq.s32.totalorder %s20, 0
      %p82 = por %p80, %p81
      %s83 = ssub.s32 %s21, %s33
      %s84 = ssub.s32 %s22, %s29
      %s85 = sor.u32 %s83, %s84
      %p86 = scmp.eq.s32.totalorder %s85, 0
      %s88 = sadd.s32 %s87, 1
      %s89 = scalar_select %p86, %s87, %s88
      %p92 = pneg %p86
      %p93 = scmp.eq.s32.totalorder %s14, 1
      %p94 = por %p92, %p93
      %p95 = scmp.ne.s32.totalorder %s87, %s90
      %p96 = scmp.eq.s32.totalorder %s14, 0
      %p97 = por %p95, %p96
      %p98 = scmp.ne.s32.totalorder %s87, %s90
      %p99 = scmp.eq.s32.totalorder %s19, 1
      %p100 = por %p98, %p99
      %p101 = scmp.ne.s32.totalorder %s90, %s91
      %p102 = scmp.eq.s32.totalorder %s19, 0
      %p103 = por %p101, %p102
      %p104 = scmp.ne.s32.totalorder %s90, %s91
      %p105 = scmp.eq.s32.totalorder %s20, 1
      %p106 = por %p104, %p105
      %p108 = scmp.ne.s32.totalorder %s91, %s107
      %p109 = scmp.eq.s32.totalorder %s20, 0
      %p110 = por %p108, %p109
      %p111 = scmp.le.s32.totalorder 1, %s14
      %p112 = scmp.lt.s32.totalorder %s14, 3
      %p113 = pnand %p111, %p112
      %p114 = pneg %p113
      // Predicated region
      $region9: #{learned_soft_aggregate.1} parent=5 // pred_check
        _
      $region10: #{learned_soft_aggregate.1} parent=5 // pred_check_branch
        %116 = sbr.rel (%p113) target = $region12
      $region11: #{learned_soft_aggregate.1} parent=5 // pred_region
        %s117 = ssub.s32 %s14, 1
        // Predicated region
        $region13: #{learned_soft_aggregate.1} parent=11 // pred_check
          %p118 = pneg %p47
        $region14: #{learned_soft_aggregate.1} parent=11 // pred_check_branch
          %120 = sbr.rel (%p118) target = $region16
        $region15: #{learned_soft_aggregate.1} parent=11 // pred_region
          _
        $region16: #{learned_soft_aggregate.1} parent=11 // pred_fallthru
          _
      $region12: #{learned_soft_aggregate.1} parent=5 // pred_fallthru
        _
      %p121 = scmp.lt.s32.totalorder %s14, 2
      // Predicated region
      $region17: #{learned_soft_aggregate.1} parent=5 // pred_check
        %p122 = pneg %p121
      $region18: #{learned_soft_aggregate.1} parent=5 // pred_check_branch
        %124 = sbr.rel (%p122) target = $region20
      $region19: #{learned_soft_aggregate.1} parent=5 // pred_region
        // Predicated region
        $region21: #{learned_soft_aggregate.1} parent=19 // pred_check
          %p125 = pneg %p69
        $region22: #{learned_soft_aggregate.1} parent=19 // pred_check_branch
          %127 = sbr.rel (%p125) target = $region24
        $region23: #{learned_soft_aggregate.1} parent=19 // pred_region
          %s128 = sand.u32 %s59, 1
          %s129 = scalar_lea.sflag [#allocation3], %s128
          %s130 = sand.u32 %s59, 1
          %s131 = smul.addr %s130, 128
          %s132 = scalar_lea.vmem [#allocation2], %s131
          %s133 = smul.u32 2, %s22
          %s135 = ssub.s32 2048, 2048
          %136 = vsyncadd %s129, %s135
          %s137 = smul.addr %s21, 16
          %s138 = sadd.s32 %s133, %s137
          %s139 = smul.addr %s138, 128
          %s140 = scalar_lea.hbm %s1, %s139
          %s141 = sshll.u32 %s132, 4
          %s142 = int_to_ptr.vmem [resolvable:$true] %s141
          %147 = dma.hbm_to_vmem [thread:$0]  %s140, 2048, %s142, %s129, 128, 128, 8
        $region24: #{learned_soft_aggregate.1} parent=19 // pred_fallthru
          _
      $region20: #{learned_soft_aggregate.1} parent=5 // pred_fallthru
        _
      %p148 = scmp.le.s32.totalorder 1, %s14
      %p149 = scmp.lt.s32.totalorder %s14, 3
      %p150 = pnand %p148, %p149
      %p151 = pneg %p150
      // Predicated region
      $region25: #{learned_soft_aggregate.1} parent=5 // pred_check
        _
      $region26: #{learned_soft_aggregate.1} parent=5 // pred_check_branch
        %153 = sbr.rel (%p150) target = $region28
      $region27: #{learned_soft_aggregate.1} parent=5 // pred_region
        %s154 = ssub.s32 %s14, 1
        %s155 = sand.u32 %s62, 1
        %s156 = scalar_lea.sflag [#allocation3], %s155
        %s157 = sand.u32 %s62, 1
        %s158 = smul.addr %s157, 128
        %s159 = scalar_lea.vmem [#allocation2], %s158
        // Predicated region
        $region29: #{learned_soft_aggregate.1} parent=27 // pred_check
          %p160 = pneg %p75
        $region30: #{learned_soft_aggregate.1} parent=27 // pred_check_branch
          %162 = sbr.rel (%p160) target = $region32
        $region31: #{learned_soft_aggregate.1} parent=27 // pred_region
          %163 = dma.done %s156, 2048
        $region32: #{learned_soft_aggregate.1} parent=27 // pred_fallthru
          _
        %p164 = pneg %p47
        %p165 = pneg %p44
        %s166 = sand.u32 %s62, 1
        %s167 = scalar_lea.sflag [#allocation3], %s166
        %s168 = sand.u32 %s62, 1
        %s169 = smul.addr %s168, 128
        %s170 = scalar_lea.vmem [#allocation2], %s169
        %p171 = pneg %p75
        %p172 = pneg %p72
        %p173 = pneg %p103
        %p174 = pneg %p100
        %s175 = sand.u32 %s90, 1
        %s176 = scalar_lea.sflag [#allocation4], %s175
        %s177 = sand.u32 %s90, 1
        %s178 = smul.addr %s177, 16
        %s179 = scalar_lea.vmem [#allocation5], %s178
        %s180 = smul.u32 2, %s24
        %s181 = smul.u32 2, %s24
        %v182 = vld [vmem:[%s159] sm:$0xff]
        %v183 = vld [vmem:[%s159 + $0x8] sm:$0xff]
        %v184 = vld [vmem:[%s159 + $0x10] sm:$0xff]
        %v185 = vld [vmem:[%s159 + $0x18] sm:$0xff]
        %v186 = vld [vmem:[%s159 + $0x20] sm:$0xff]
        %v187 = vld [vmem:[%s159 + $0x28] sm:$0xff]
        %v188 = vld [vmem:[%s159 + $0x30] sm:$0xff]
        %v189 = vld [vmem:[%s159 + $0x38] sm:$0xff]
        %v190 = vld [vmem:[%s159 + $0x40] sm:$0xff]
        %v191 = vld [vmem:[%s159 + $0x48] sm:$0xff]
        %v192 = vld [vmem:[%s159 + $0x50] sm:$0xff]
        %v193 = vld [vmem:[%s159 + $0x58] sm:$0xff]
        %v194 = vld [vmem:[%s159 + $0x60] sm:$0xff]
        %v195 = vld [vmem:[%s159 + $0x68] sm:$0xff]
        %v196 = vld [vmem:[%s159 + $0x70] sm:$0xff]
        %v197 = vld [vmem:[%s159 + $0x78] sm:$0xff]
        %v198 = vld [vmem:[%s0] sm:$0x1]
        %v200 = vlaneseq
        %v201 = vshrl.u32 %v200, 7
        %v202 = vsub.s32 0, %v201
        %v203 = vrot.slane %v198, %v202
        %v205 = vmul.f32 %v182, %v203
        %v206 = vmul.f32 %v183, %v203
        %v207 = vmul.f32 %v184, %v203
        %v208 = vmul.f32 %v185, %v203
        %v209 = vmul.f32 %v186, %v203
        %v210 = vmul.f32 %v187, %v203
        %v211 = vmul.f32 %v188, %v203
        %v212 = vmul.f32 %v189, %v203
        %v213 = vmul.f32 %v190, %v203
        %v214 = vmul.f32 %v191, %v203
        %v215 = vmul.f32 %v192, %v203
        %v216 = vmul.f32 %v193, %v203
        %v217 = vmul.f32 %v194, %v203
        %v218 = vmul.f32 %v195, %v203
        %v219 = vmul.f32 %v196, %v203
        %v220 = vmul.f32 %v197, %v203
        %vm221 = vcmask 261120
        %v222 = vsel %vm221, %v205, 0.0
        %223 = vadd.xlane.f32.xlu0 %v222
        %v224 = vpop.xlane.xlu0 %223
        %v225 = vsel %vm221, %v206, 0.0
        %226 = vadd.xlane.f32.xlu0 %v225
        %v227 = vpop.xlane.xlu0 %226
        %v228 = vsel %vm221, %v207, 0.0
        %229 = vadd.xlane.f32.xlu0 %v228
        %v230 = vpop.xlane.xlu0 %229
        %v231 = vsel %vm221, %v208, 0.0
        %232 = vadd.xlane.f32.xlu0 %v231
        %v233 = vpop.xlane.xlu0 %232
        %v234 = vsel %vm221, %v209, 0.0
        %235 = vadd.xlane.f32.xlu0 %v234
        %v236 = vpop.xlane.xlu0 %235
        %v237 = vsel %vm221, %v210, 0.0
        %238 = vadd.xlane.f32.xlu0 %v237
        %v239 = vpop.xlane.xlu0 %238
        %v240 = vsel %vm221, %v211, 0.0
        %241 = vadd.xlane.f32.xlu0 %v240
        %v242 = vpop.xlane.xlu0 %241
        %v243 = vsel %vm221, %v212, 0.0
        %244 = vadd.xlane.f32.xlu0 %v243
        %v245 = vpop.xlane.xlu0 %244
        %v246 = vsel %vm221, %v213, 0.0
        %247 = vadd.xlane.f32.xlu0 %v246
        %v248 = vpop.xlane.xlu0 %247
        %v249 = vsel %vm221, %v214, 0.0
        %250 = vadd.xlane.f32.xlu0 %v249
        %v251 = vpop.xlane.xlu0 %250
        %v252 = vsel %vm221, %v215, 0.0
        %253 = vadd.xlane.f32.xlu0 %v252
        %v254 = vpop.xlane.xlu0 %253
        %v255 = vsel %vm221, %v216, 0.0
        %256 = vadd.xlane.f32.xlu0 %v255
        %v257 = vpop.xlane.xlu0 %256
        %v258 = vsel %vm221, %v217, 0.0
        %259 = vadd.xlane.f32.xlu0 %v258
        %v260 = vpop.xlane.xlu0 %259
        %v261 = vsel %vm221, %v218, 0.0
        %262 = vadd.xlane.f32.xlu0 %v261
        %v263 = vpop.xlane.xlu0 %262
        %v264 = vsel %vm221, %v219, 0.0
        %265 = vadd.xlane.f32.xlu0 %v264
        %v266 = vpop.xlane.xlu0 %265
        %v267 = vsel %vm221, %v220, 0.0
        %268 = vadd.xlane.f32.xlu0 %v267
        %v269 = vpop.xlane.xlu0 %268
        %v270 = vmax.f32 %v224, %v236
        %v271 = vmax.f32 %v230, %v242
        %v272 = vmax.f32 %v270, %v248
        %v273 = vmax.f32 %v271, %v254
        %v274 = vmax.f32 %v272, %v260
        %v275 = vmax.f32 %v273, %v266
        %v276 = vmax.f32 %v274, %v275
        %v277 = vmax.f32 %v227, %v239
        %v278 = vmax.f32 %v233, %v245
        %v279 = vmax.f32 %v277, %v251
        %v280 = vmax.f32 %v278, %v257
        %v281 = vmax.f32 %v279, %v263
        %v282 = vmax.f32 %v280, %v269
        %v283 = vmax.f32 %v281, %v282
        %v284 = vsub.f32 %v224, %v276
        %v285 = vsub.f32 %v227, %v283
        %v286 = vsub.f32 %v230, %v276
        %v287 = vsub.f32 %v233, %v283
        %v288 = vsub.f32 %v236, %v276
        %v289 = vsub.f32 %v239, %v283
        %v290 = vsub.f32 %v242, %v276
        %v291 = vsub.f32 %v245, %v283
        %v292 = vsub.f32 %v248, %v276
        %v293 = vsub.f32 %v251, %v283
        %v294 = vsub.f32 %v254, %v276
        %v295 = vsub.f32 %v257, %v283
        %v296 = vsub.f32 %v260, %v276
        %v297 = vsub.f32 %v263, %v283
        %v298 = vsub.f32 %v266, %v276
        %v299 = vsub.f32 %v269, %v283
        %v300 = vmul.f32 %v284, 1.442695
        %v301 = vpow.pop %v300
        %v302 = vmul.f32 %v285, 1.442695
        %v303 = vpow.pop %v302
        %v304 = vmul.f32 %v286, 1.442695
        %v305 = vpow.pop %v304
        %v306 = vmul.f32 %v287, 1.442695
        %v307 = vpow.pop %v306
        %v308 = vmul.f32 %v288, 1.442695
        %v309 = vpow.pop %v308
        %v310 = vmul.f32 %v289, 1.442695
        %v311 = vpow.pop %v310
        %v312 = vmul.f32 %v290, 1.442695
        %v313 = vpow.pop %v312
        %v314 = vmul.f32 %v291, 1.442695
        %v315 = vpow.pop %v314
        %v316 = vmul.f32 %v292, 1.442695
        %v317 = vpow.pop %v316
        %v318 = vmul.f32 %v293, 1.442695
        %v319 = vpow.pop %v318
        %v320 = vmul.f32 %v294, 1.442695
        %v321 = vpow.pop %v320
        %v322 = vmul.f32 %v295, 1.442695
        %v323 = vpow.pop %v322
        %v324 = vmul.f32 %v296, 1.442695
        %v325 = vpow.pop %v324
        %v326 = vmul.f32 %v297, 1.442695
        %v327 = vpow.pop %v326
        %v328 = vmul.f32 %v298, 1.442695
        %v329 = vpow.pop %v328
        %v330 = vmul.f32 %v299, 1.442695
        %v331 = vpow.pop %v330
        %v332 = vadd.f32 %v301, %v305
        %v333 = vadd.f32 %v332, %v309
        %v334 = vadd.f32 %v333, %v313
        %v335 = vadd.f32 %v334, %v317
        %v336 = vadd.f32 %v335, %v321
        %v337 = vadd.f32 %v336, %v325
        %v338 = vadd.f32 %v337, %v329
        %v339 = vadd.f32 %v303, %v307
        %v340 = vadd.f32 %v339, %v311
        %v341 = vadd.f32 %v340, %v315
        %v342 = vadd.f32 %v341, %v319
        %v343 = vadd.f32 %v342, %v323
        %v344 = vadd.f32 %v343, %v327
        %v345 = vadd.f32 %v344, %v331
        %v346 = vmul.f32 %v182, %v301
        %v347 = vmul.f32 %v183, %v303
        %v348 = vmul.f32 %v184, %v305
        %v349 = vmul.f32 %v185, %v307
        %v350 = vmul.f32 %v186, %v309
        %v351 = vmul.f32 %v187, %v311
        %v352 = vmul.f32 %v188, %v313
        %v353 = vmul.f32 %v189, %v315
        %v354 = vmul.f32 %v190, %v317
        %v355 = vmul.f32 %v191, %v319
        %v356 = vmul.f32 %v192, %v321
        %v357 = vmul.f32 %v193, %v323
        %v358 = vmul.f32 %v194, %v325
        %v359 = vmul.f32 %v195, %v327
        %v360 = vmul.f32 %v196, %v329
        %v361 = vmul.f32 %v197, %v331
        %v362 = vsel %vm221, %v346, 0.0
        %v363 = vsel %vm221, %v348, 0.0
        %v364 = vadd.f32 %v362, %v363
        %v365 = vsel %vm221, %v350, 0.0
        %v366 = vadd.f32 %v364, %v365
        %v367 = vsel %vm221, %v352, 0.0
        %v368 = vadd.f32 %v366, %v367
        %v369 = vsel %vm221, %v354, 0.0
        %v370 = vadd.f32 %v368, %v369
        %v371 = vsel %vm221, %v356, 0.0
        %v372 = vadd.f32 %v370, %v371
        %v373 = vsel %vm221, %v358, 0.0
        %v374 = vadd.f32 %v372, %v373
        %v375 = vsel %vm221, %v360, 0.0
        %v376 = vadd.f32 %v374, %v375
        %v377 = vsel %vm221, %v347, 0.0
        %v378 = vsel %vm221, %v349, 0.0
        %v379 = vadd.f32 %v377, %v378
        %v380 = vsel %vm221, %v351, 0.0
        %v381 = vadd.f32 %v379, %v380
        %v382 = vsel %vm221, %v353, 0.0
        %v383 = vadd.f32 %v381, %v382
        %v384 = vsel %vm221, %v355, 0.0
        %v385 = vadd.f32 %v383, %v384
        %v386 = vsel %vm221, %v357, 0.0
        %v387 = vadd.f32 %v385, %v386
        %v388 = vsel %vm221, %v359, 0.0
        %v389 = vadd.f32 %v387, %v388
        %v390 = vsel %vm221, %v361, 0.0
        %v391 = vadd.f32 %v389, %v390
        %v392 = vrcp.pop %v338
        %v393 = vrcp.pop %v345
        %v394 = vmul.f32 %v376, %v392
        %v395 = vmul.f32 %v391, %v393
        %396 = vst.msk [vmem:[%s179] sm:$0xff] %vm221, %v394
        %397 = vst.msk [vmem:[%s179 + $0x8] sm:$0xff] %vm221, %v395
        %s398 = sand.u32 %s90, 1
        %s399 = scalar_lea.sflag [#allocation4], %s398
        %s400 = sand.u32 %s90, 1
        %s401 = smul.addr %s400, 16
        %s402 = scalar_lea.vmem [#allocation5], %s401
        // Predicated region
        $region33: #{learned_soft_aggregate.1} parent=27 // pred_check
          %p403 = pneg %p100
        $region34: #{learned_soft_aggregate.1} parent=27 // pred_check_branch
          %405 = sbr.rel (%p403) target = $region36
        $region35: #{learned_soft_aggregate.1} parent=27 // pred_region
          %s406 = smul.u32 2, %s24
          %s408 = ssub.s32 256, 256
          %409 = vsyncadd %s399, %s408
          %s410 = smul.addr %s23, 2
          %s411 = sadd.s32 %s406, %s410
          %s412 = smul.addr %s411, 128
          %s413 = scalar_lea.hbm %s2, %s412
          %s414 = sshll.u32 %s402, 4
          %s415 = int_to_ptr.vmem [resolvable:$true] %s414
          %420 = dma.vmem_to_hbm [thread:$0]  %s415, 256, %s413, %s399, 128, 128, 8
        $region36: #{learned_soft_aggregate.1} parent=27 // pred_fallthru
          _
      $region28: #{learned_soft_aggregate.1} parent=5 // pred_fallthru
        _
      %p421 = scmp.le.s32.totalorder 2, %s14
      // Predicated region
      $region37: #{learned_soft_aggregate.1} parent=5 // pred_check
        %p422 = pneg %p421
      $region38: #{learned_soft_aggregate.1} parent=5 // pred_check_branch
        %424 = sbr.rel (%p422) target = $region40
      $region39: #{learned_soft_aggregate.1} parent=5 // pred_region
        %s425 = ssub.s32 %s14, 2
        // Predicated region
        $region41: #{learned_soft_aggregate.1} parent=39 // pred_check
          %p426 = pneg %p106
        $region42: #{learned_soft_aggregate.1} parent=39 // pred_check_branch
          %428 = sbr.rel (%p426) target = $region44
        $region43: #{learned_soft_aggregate.1} parent=39 // pred_region
          %s429 = sand.u32 %s91, 1
          %s430 = scalar_lea.sflag [#allocation4], %s429
          %s431 = sand.u32 %s91, 1
          %s432 = smul.addr %s431, 16
          %s433 = scalar_lea.vmem [#allocation5], %s432
          %434 = dma.done %s430, 256
        $region44: #{learned_soft_aggregate.1} parent=39 // pred_fallthru
          _
      $region40: #{learned_soft_aggregate.1} parent=5 // pred_fallthru
        _
    $region6: #{learned_soft_aggregate.1} parent=1 // loop_footer
      %s18 = sadd.s32 1, %s14
    $region7: #{learned_soft_aggregate.1} parent=1 // loop_footer_branch
      %13 = sbr.rel target = $region3
    $region8: #{learned_soft_aggregate.1} parent=1 // loop_exit
      _
    %435 = vsyncpa [#allocation3], 1
    %s436 = scalar_lea.sflag [#allocation3], 1
    %437 = vsyncpa %s436, 1
    %438 = vsyncpa [#allocation4], 1
    %s439 = scalar_lea.sflag [#allocation4], 1
    %440 = vsyncpa %s439, 1

</llo_original>
